<compile_context>
chip_gen: v7x
topology: tpu7x:2x2x1
jax: 0.10.0
libtpu: 0.0.40
codegen_flags: <defaults>
</compile_context>

<pallas_src>
import functools
import math

import jax
import jax.numpy as jnp
from jax import lax
from jax.experimental import pallas as pl
from jax.experimental.pallas import tpu as pltpu

C_RBF = 1.0 / math.sqrt(2.0 * math.pi)
K_EXP2 = -0.5 * math.log2(math.e)   # exp(-0.5*t) == exp2(K_EXP2 * t)
LANES = 128
CHUNK_ROWS = 64                     # rows per register-resident in-kernel chunk


def _round_up(x, m):
    return ((x + m - 1) // m) * m


def _rbf_kernel(params_ref, x_ref, o_ref, *, n, chunk_rows):
    # params_ref : SMEM f32[3n+1] = [w0(n) | b0(n) | C*w1(n) | b1(1)]
    # x_ref/o_ref: VMEM (tile_rows, 128) tiles, batch on sublanes+lanes.
    b1 = params_ref[3 * n]
    num_chunks = x_ref.shape[0] // chunk_rows

    def compute(x):
        acc = jnp.full_like(x, b1)
        # Unrolled n-feature loop: VALU mul/add + EUP exp2; batch stays on
        # lanes, so no MXU and no cross-lane (XLU) reduction is needed.
        for j in range(n):
            h = x * params_ref[j] + params_ref[n + j]        # linear0 (bcast MAC)
            g = jnp.exp2((h * h) * K_EXP2)                   # gaussian, exp folded to exp2
            acc = acc + g * params_ref[2 * n + j]            # * (C * W1[j]), accumulate
        return acc

    if num_chunks <= 1:
        o_ref[...] = compute(x_ref[...])
    else:
        # Chunked to bound vreg live ranges (x/acc/h ~ 24-32 vregs per chunk).
        def chunk_body(c, carry):
            r = pl.multiple_of(c * chunk_rows, chunk_rows)
            o_ref[pl.ds(r, chunk_rows), :] = compute(x_ref[pl.ds(r, chunk_rows), :])
            return carry

        lax.fori_loop(0, num_chunks, chunk_body, 0, unroll=False)


def rbf_forward(x, w0, b0, w1, b1, *, max_tile_rows=2048):
    """Fused RBF forward.

    x : (B, 1) f32;  w0,b0,w1: (n,) f32;  b1: (1,) f32  ->  (B, 1) f32
    """
    B = x.shape[0]
    n = int(w0.shape[0])

    # Pack parameters into one SMEM-resident vector; fold 1/sqrt(2*pi) into w1.
    params = jnp.concatenate([
        w0.astype(jnp.float32).reshape(n),
        b0.astype(jnp.float32).reshape(n),
        (w1.astype(jnp.float32) * C_RBF).reshape(n),
        b1.astype(jnp.float32).reshape(1),
    ])

    rows = pl.cdiv(B, LANES)

    # Lane-dense batch layout (batch element per lane). Fast path avoids the
    # wrapper-side pad and output-slice copies entirely when B % 128 == 0.
    if B % LANES == 0:
        x2d = jnp.reshape(x.astype(jnp.float32), (rows, LANES))
        pad = 0
    else:
        pad = rows * LANES - B
        x_flat = jnp.reshape(x.astype(jnp.float32), (B,))
        x2d = jnp.reshape(jnp.pad(x_flat, (0, pad)), (rows, LANES))

    # Tile selection: big tiles (VMEM is plentiful) but at least 2 grid steps
    # when there is enough work so "parallel" can shard across v7x's 2 TCs.
    # The last grid block may be ragged; Pallas masks it.
    if rows <= 8:
        tile_rows = rows                      # block == full array rows (always legal)
    else:
        num_tiles = max(2, pl.cdiv(rows, max_tile_rows))
        tile_rows = _round_up(pl.cdiv(rows, num_tiles), 8)
        if tile_rows > CHUNK_ROWS:
            tile_rows = _round_up(tile_rows, CHUNK_ROWS)
    chunk_rows = min(CHUNK_ROWS, tile_rows)   # tile_rows % chunk_rows == 0 by construction

    grid = (pl.cdiv(rows, tile_rows),)

    out2d = pl.pallas_call(
        functools.partial(_rbf_kernel, n=n, chunk_rows=chunk_rows),
        out_shape=jax.ShapeDtypeStruct((rows, LANES), jnp.float32),
        grid_spec=pltpu.PrefetchScalarGridSpec(
            num_scalar_prefetch=0,
            grid=grid,
            in_specs=[
                pl.BlockSpec(memory_space=pltpu.MemorySpace.SMEM),    # packed params
                pl.BlockSpec((tile_rows, LANES), lambda i: (i, 0)),   # x tile
            ],
            out_specs=pl.BlockSpec((tile_rows, LANES), lambda i: (i, 0)),
        ),
        compiler_params=pltpu.CompilerParams(
            dimension_semantics=("parallel",),   # shards multi-step grids across v7x's 2 TCs
        ),
    )(params, x2d)

    if pad == 0:
        return jnp.reshape(out2d, (B, 1))
    return jnp.reshape(jnp.reshape(out2d, (rows * LANES,))[:B], (B, 1))


def init_params(key, n=5):
    """PyTorch nn.Linear-style init (U(-1/sqrt(fan_in), +1/sqrt(fan_in)))."""
    k0, k1, k2, k3 = jax.random.split(key, 4)
    bound0 = 1.0 / math.sqrt(1.0)   # fan_in = 1 for linear0
    bound1 = 1.0 / math.sqrt(n)     # fan_in = n for linear1
    w0 = jax.random.uniform(k0, (n,), jnp.float32, -bound0, bound0)
    b0 = jax.random.uniform(k1, (n,), jnp.float32, -bound0, bound0)
    w1 = jax.random.uniform(k2, (n,), jnp.float32, -bound1, bound1)
    b1 = jax.random.uniform(k3, (1,), jnp.float32, -bound1, bound1)
    return w0, b0, w1, b1


def rbf_reference(x, w0, b0, w1, b1):
    """Pure-JAX reference of the PyTorch forward pass."""
    h = x @ w0[None, :] + b0[None, :]          # linear0        (B, n)
    g = jnp.exp(-0.5 * h * h) * C_RBF          # gaussian RBF   (B, n)
    return g @ w1[:, None] + b1[None, :]       # linear1        (B, 1)


if __name__ == "__main__":
    key = jax.random.PRNGKey(0)
    kp, kx1, kx2, kx3 = jax.random.split(key, 4)

    n = 5
    w0, b0, w1, b1 = init_params(kp, n=n)

    # Cover the three code paths:
    #   B=300   -> padded path, single small block (rows < 8)
    #   B=2560  -> fast path (B%128==0), 2-step grid, ragged last block
    #   B=38400 -> fast path, 2-step grid, in-kernel chunk loop (3 chunks/tile)
    for kx, B in ((kx1, 300), (kx2, 2560), (kx3, 38400)):
        x = jax.random.normal(kx, (B, 1), jnp.float32)
        out = jax.block_until_ready(rbf_forward(x, w0, b0, w1, b1))
        ref = rbf_reference(x, w0, b0, w1, b1)
        assert out.shape == (B, 1), (B, out.shape)
        assert jnp.allclose(out, ref, atol=1e-5, rtol=1e-5), (B, out, ref)

    print("KERNEL_OK")
</pallas_src>

<mosaic_0001>
module attributes {stable_mosaic.version = 11 : i64} {
  func.func @_rbf_kernel(%arg0: i32, %arg1: memref<16xf32, #tpu.memory_space<smem>>, %arg2: memref<3x128xf32, #tpu.memory_space<vmem>>, %arg3: memref<3x128xf32, #tpu.memory_space<vmem>>) attributes {dimension_semantics = [#tpu.dimension_semantics<parallel>], iteration_bounds = array<i64: 1>, scalar_prefetch = 0 : i64, scratch_operands = 0 : i64, tpu.core_type = #tpu.core_type<tc>, window_params = [{transform_indices = @transform_0, window_bounds = array<i64: 16>}, {transform_indices = @transform_1, window_bounds = array<i64: 3, 128>}, {transform_indices = @transform_2, window_bounds = array<i64: 3, 128>}]} {
    %c15 = arith.constant 15 : index
    %0 = memref.load %arg1[%c15] : memref<16xf32, #tpu.memory_space<smem>>
    %c0 = arith.constant 0 : index
    %c0_0 = arith.constant 0 : index
    %1 = vector.load %arg2[%c0, %c0_0] : memref<3x128xf32, #tpu.memory_space<vmem>>, vector<3x128xf32>
    %2 = vector.broadcast %0 : f32 to vector<3x128xf32>
    %c0_1 = arith.constant 0 : index
    %3 = memref.load %arg1[%c0_1] : memref<16xf32, #tpu.memory_space<smem>>
    %4 = vector.broadcast %3 : f32 to vector<3x128xf32>
    %5 = arith.mulf %1, %4 : vector<3x128xf32>
    %c5 = arith.constant 5 : index
    %6 = memref.load %arg1[%c5] : memref<16xf32, #tpu.memory_space<smem>>
    %7 = vector.broadcast %6 : f32 to vector<3x128xf32>
    %8 = arith.addf %5, %7 : vector<3x128xf32>
    %9 = arith.mulf %8, %8 : vector<3x128xf32>
    %cst = arith.constant -0.72134751 : f32
    %10 = vector.broadcast %cst : f32 to vector<3x128xf32>
    %11 = arith.mulf %9, %10 : vector<3x128xf32>
    %12 = math.exp2 %11 : vector<3x128xf32>
    %c10 = arith.constant 10 : index
    %13 = memref.load %arg1[%c10] : memref<16xf32, #tpu.memory_space<smem>>
    %14 = vector.broadcast %13 : f32 to vector<3x128xf32>
    %15 = arith.mulf %12, %14 : vector<3x128xf32>
    %16 = arith.addf %2, %15 : vector<3x128xf32>
    %c1 = arith.constant 1 : index
    %17 = memref.load %arg1[%c1] : memref<16xf32, #tpu.memory_space<smem>>
    %18 = vector.broadcast %17 : f32 to vector<3x128xf32>
    %19 = arith.mulf %1, %18 : vector<3x128xf32>
    %c6 = arith.constant 6 : index
    %20 = memref.load %arg1[%c6] : memref<16xf32, #tpu.memory_space<smem>>
    %21 = vector.broadcast %20 : f32 to vector<3x128xf32>
    %22 = arith.addf %19, %21 : vector<3x128xf32>
    %23 = arith.mulf %22, %22 : vector<3x128xf32>
    %cst_2 = arith.constant -0.72134751 : f32
    %24 = vector.broadcast %cst_2 : f32 to vector<3x128xf32>
    %25 = arith.mulf %23, %24 : vector<3x128xf32>
    %26 = math.exp2 %25 : vector<3x128xf32>
    %c11 = arith.constant 11 : index
    %27 = memref.load %arg1[%c11] : memref<16xf32, #tpu.memory_space<smem>>
    %28 = vector.broadcast %27 : f32 to vector<3x128xf32>
    %29 = arith.mulf %26, %28 : vector<3x128xf32>
    %30 = arith.addf %16, %29 : vector<3x128xf32>
    %c2 = arith.constant 2 : index
    %31 = memref.load %arg1[%c2] : memref<16xf32, #tpu.memory_space<smem>>
    %32 = vector.broadcast %31 : f32 to vector<3x128xf32>
    %33 = arith.mulf %1, %32 : vector<3x128xf32>
    %c7 = arith.constant 7 : index
    %34 = memref.load %arg1[%c7] : memref<16xf32, #tpu.memory_space<smem>>
    %35 = vector.broadcast %34 : f32 to vector<3x128xf32>
    %36 = arith.addf %33, %35 : vector<3x128xf32>
    %37 = arith.mulf %36, %36 : vector<3x128xf32>
    %cst_3 = arith.constant -0.72134751 : f32
    %38 = vector.broadcast %cst_3 : f32 to vector<3x128xf32>
    %39 = arith.mulf %37, %38 : vector<3x128xf32>
    %40 = math.exp2 %39 : vector<3x128xf32>
    %c12 = arith.constant 12 : index
    %41 = memref.load %arg1[%c12] : memref<16xf32, #tpu.memory_space<smem>>
    %42 = vector.broadcast %41 : f32 to vector<3x128xf32>
    %43 = arith.mulf %40, %42 : vector<3x128xf32>
    %44 = arith.addf %30, %43 : vector<3x128xf32>
    %c3 = arith.constant 3 : index
    %45 = memref.load %arg1[%c3] : memref<16xf32, #tpu.memory_space<smem>>
    %46 = vector.broadcast %45 : f32 to vector<3x128xf32>
    %47 = arith.mulf %1, %46 : vector<3x128xf32>
    %c8 = arith.constant 8 : index
    %48 = memref.load %arg1[%c8] : memref<16xf32, #tpu.memory_space<smem>>
    %49 = vector.broadcast %48 : f32 to vector<3x128xf32>
    %50 = arith.addf %47, %49 : vector<3x128xf32>
    %51 = arith.mulf %50, %50 : vector<3x128xf32>
    %cst_4 = arith.constant -0.72134751 : f32
    %52 = vector.broadcast %cst_4 : f32 to vector<3x128xf32>
    %53 = arith.mulf %51, %52 : vector<3x128xf32>
    %54 = math.exp2 %53 : vector<3x128xf32>
    %c13 = arith.constant 13 : index
    %55 = memref.load %arg1[%c13] : memref<16xf32, #tpu.memory_space<smem>>
    %56 = vector.broadcast %55 : f32 to vector<3x128xf32>
    %57 = arith.mulf %54, %56 : vector<3x128xf32>
    %58 = arith.addf %44, %57 : vector<3x128xf32>
    %c4 = arith.constant 4 : index
    %59 = memref.load %arg1[%c4] : memref<16xf32, #tpu.memory_space<smem>>
    %60 = vector.broadcast %59 : f32 to vector<3x128xf32>
    %61 = arith.mulf %1, %60 : vector<3x128xf32>
    %c9 = arith.constant 9 : index
    %62 = memref.load %arg1[%c9] : memref<16xf32, #tpu.memory_space<smem>>
    %63 = vector.broadcast %62 : f32 to vector<3x128xf32>
    %64 = arith.addf %61, %63 : vector<3x128xf32>
    %65 = arith.mulf %64, %64 : vector<3x128xf32>
    %cst_5 = arith.constant -0.72134751 : f32
    %66 = vector.broadcast %cst_5 : f32 to vector<3x128xf32>
    %67 = arith.mulf %65, %66 : vector<3x128xf32>
    %68 = math.exp2 %67 : vector<3x128xf32>
    %c14 = arith.constant 14 : index
    %69 = memref.load %arg1[%c14] : memref<16xf32, #tpu.memory_space<smem>>
    %70 = vector.broadcast %69 : f32 to vector<3x128xf32>
    %71 = arith.mulf %68, %70 : vector<3x128xf32>
    %72 = arith.addf %58, %71 : vector<3x128xf32>
    %c0_6 = arith.constant 0 : index
    %c0_7 = arith.constant 0 : index
    %73 = vector.load %arg3[%c0_6, %c0_7] : memref<3x128xf32, #tpu.memory_space<vmem>>, vector<3x128xf32>
    tpu.vector_store %arg3[%c0_6, %c0_7], %72 {strides = array<i32>} : memref<3x128xf32, #tpu.memory_space<vmem>>, vector<3x128xf32>,
    return
  }
  func.func @transform_0(%arg0: i32) -> i32 {
    %c0_i32 = arith.constant 0 : i32
    %c0_i32_0 = arith.constant 0 : i32
    return %c0_i32 : i32
  }
  func.func @transform_1(%arg0: i32) -> (i32, i32) {
    %c0_i32 = arith.constant 0 : i32
    %c0_i32_0 = arith.constant 0 : i32
    return %arg0, %c0_i32 : i32, i32
  }
  func.func @transform_2(%arg0: i32) -> (i32, i32) {
    %c0_i32 = arith.constant 0 : i32
    %c0_i32_0 = arith.constant 0 : i32
    return %arg0, %c0_i32 : i32, i32
  }
}

</mosaic_0001>

<llo_original>
// kernel: tpu_custom_call.1
$region0: #{tpu_custom_call.1}
  #allocation0 [shape = 'u32[]', space=smem, size = 0x4, offset = 0x4, fixed_abs, tag = 'smem constant byte address 0x4 - core index']
  #allocation1 [shape = 'u32[144,128]{1,0:T(1,128)}', space=vmem, size = 0x12000, scoped, tag = 'internal scratch']
  %s0 = inlined_call_operand.hbm [shape: f32[16], index: 0, kind: input, shape index: {}]
  %s1 = inlined_call_operand.hbm [shape: f32[3,128], index: 1, kind: input, shape index: {}]
  %s2 = inlined_call_operand.hbm [shape: f32[3,128], index: 2, kind: output, shape index: {}]
  %s3 = sld [smem:[#allocation0]]
  $region26: #{tpu_custom_call.1} parent=0
    _
  %s5 = ssub.s32 1, %s3
  %s6 = scalar_select 0, %s5, %s3
  $region1: #{tpu_custom_call.1} parent=0
    #allocation2 [shape = 'u8[512]{0}', space=smem, size = 0x200, scoped, tag = 'input window, operand 0, single buffered']
    #allocation3 [shape = 's32[1]{0}', space=sflag, size = 0x4, scoped, tag = 'scoped memory for tpu_custom_call.1']
    #allocation4 [shape = 's32[1]{0}', space=sflag, size = 0x4, scoped, tag = 'scoped memory for tpu_custom_call.1']
    #allocation5 [shape = 's32[1]{0}', space=sflag, size = 0x4, scoped, tag = 'scoped memory for tpu_custom_call.1']
    #allocation6 [shape = 'u8[2048]{0}', space=vmem, size = 0x800, scoped, tag = 'input window, operand 1, single buffered']
    #allocation7 [shape = 'u8[2048]{0}', space=vmem, size = 0x800, scoped, tag = 'output window, operand 0, single buffered']
    %7 = vsyncpa [#allocation5], 0
    %8 = vsyncpa [#allocation3], 0
    %9 = vsyncpa [#allocation4], 0
    // Predicated region
    $region2: #{tpu_custom_call.1} parent=1 // pred_check
      _
    $region3: #{tpu_custom_call.1} parent=1 // pred_check_branch
      %11 = sbr.rel (0) target = $region5
    $region4: #{tpu_custom_call.1} parent=1 // pred_region
      %s13 = ssub.s32 16, 16
      %14 = vsyncadd [#allocation5], %s13
      %17 = dma.hbm_to_smem %s0, 16, [#allocation2], [#allocation5]
    $region5: #{tpu_custom_call.1} parent=1 // pred_fallthru
      _
    // Predicated region
    $region6: #{tpu_custom_call.1} parent=1 // pred_check
      _
    $region7: #{tpu_custom_call.1} parent=1 // pred_check_branch
      %19 = sbr.rel (0) target = $region9
    $region8: #{tpu_custom_call.1} parent=1 // pred_region
      %s21 = ssub.s32 64, 64
      %22 = vsyncadd [#allocation3], %s21
      %s24 = sshll.u32 [#allocation6], 4
      %s25 = int_to_ptr.vmem [resolvable:$true] %s24
      %27 = dma.hbm_to_vmem [thread:$0]  %s1, 64, %s25, [#allocation3]
    $region9: #{tpu_custom_call.1} parent=1 // pred_fallthru
      _
    // Predicated region
    $region10: #{tpu_custom_call.1} parent=1 // pred_check
      _
    $region11: #{tpu_custom_call.1} parent=1 // pred_check_branch
      %29 = sbr.rel (0) target = $region13
    $region12: #{tpu_custom_call.1} parent=1 // pred_region
      %30 = dma.done [#allocation5], 16
    $region13: #{tpu_custom_call.1} parent=1 // pred_fallthru
      _
    // Predicated region
    $region14: #{tpu_custom_call.1} parent=1 // pred_check
      _
    $region15: #{tpu_custom_call.1} parent=1 // pred_check_branch
      %32 = sbr.rel (0) target = $region17
    $region16: #{tpu_custom_call.1} parent=1 // pred_region
      %33 = dma.done [#allocation3], 64
    $region17: #{tpu_custom_call.1} parent=1 // pred_fallthru
      _
    %34 = sfence
    %s35 = sld [smem:[#allocation2 + $0xf]]
    %v36 = vld [vmem:[#allocation6] sm:$0x7]
    %v37 = vstv %s35
    %s38 = sld [smem:[#allocation2]]
    %v39 = vstv %s38
    %v40 = vmul.f32 %v36, %v39
    %s41 = sld [smem:[#allocation2 + $0x5]]
    %v42 = vstv %s41
    %v43 = vadd.f32 %v40, %v42
    %v44 = vmul.f32 %v43, %v43
    %v45 = vmul.f32 %v44, -0.7213475
    %v46 = vpow.pop %v45
    %s47 = sld [smem:[#allocation2 + $0xa]]
    %v48 = vstv %s47
    %v49 = vmul.f32 %v46, %v48
    %v50 = vadd.f32 %v37, %v49
    %s51 = sld [smem:[#allocation2 + $0x1]]
    %v52 = vstv %s51
    %v53 = vmul.f32 %v36, %v52
    %s54 = sld [smem:[#allocation2 + $0x6]]
    %v55 = vstv %s54
    %v56 = vadd.f32 %v53, %v55
    %v57 = vmul.f32 %v56, %v56
    %v58 = vmul.f32 %v57, -0.7213475
    %v59 = vpow.pop %v58
    %s60 = sld [smem:[#allocation2 + $0xb]]
    %v61 = vstv %s60
    %v62 = vmul.f32 %v59, %v61
    %v63 = vadd.f32 %v50, %v62
    %s64 = sld [smem:[#allocation2 + $0x2]]
    %v65 = vstv %s64
    %v66 = vmul.f32 %v36, %v65
    %s67 = sld [smem:[#allocation2 + $0x7]]
    %v68 = vstv %s67
    %v69 = vadd.f32 %v66, %v68
    %v70 = vmul.f32 %v69, %v69
    %v71 = vmul.f32 %v70, -0.7213475
    %v72 = vpow.pop %v71
    %s73 = sld [smem:[#allocation2 + $0xc]]
    %v74 = vstv %s73
    %v75 = vmul.f32 %v72, %v74
    %v76 = vadd.f32 %v63, %v75
    %s77 = sld [smem:[#allocation2 + $0x3]]
    %v78 = vstv %s77
    %v79 = vmul.f32 %v36, %v78
    %s80 = sld [smem:[#allocation2 + $0x8]]
    %v81 = vstv %s80
    %v82 = vadd.f32 %v79, %v81
    %v83 = vmul.f32 %v82, %v82
    %v84 = vmul.f32 %v83, -0.7213475
    %v85 = vpow.pop %v84
    %s86 = sld [smem:[#allocation2 + $0xd]]
    %v87 = vstv %s86
    %v88 = vmul.f32 %v85, %v87
    %v89 = vadd.f32 %v76, %v88
    %s90 = sld [smem:[#allocation2 + $0x4]]
    %v91 = vstv %s90
    %v92 = vmul.f32 %v36, %v91
    %s93 = sld [smem:[#allocation2 + $0x9]]
    %v94 = vstv %s93
    %v95 = vadd.f32 %v92, %v94
    %v96 = vmul.f32 %v95, %v95
    %v97 = vmul.f32 %v96, -0.7213475
    %v98 = vpow.pop %v97
    %s99 = sld [smem:[#allocation2 + $0xe]]
    %v100 = vstv %s99
    %v101 = vmul.f32 %v98, %v100
    %v102 = vadd.f32 %v89, %v101
    %103 = vst [vmem:[#allocation7] sm:$0x7] %v102
    // Predicated region
    $region18: #{tpu_custom_call.1} parent=1 // pred_check
      _
    $region19: #{tpu_custom_call.1} parent=1 // pred_check_branch
      %105 = sbr.rel (0) target = $region21
    $region20: #{tpu_custom_call.1} parent=1 // pred_region
      %s107 = ssub.s32 64, 64
      %108 = vsyncadd [#allocation4], %s107
      %s110 = sshll.u32 [#allocation7], 4
      %s111 = int_to_ptr.vmem [resolvable:$true] %s110
      %113 = dma.vmem_to_hbm [thread:$0]  %s111, 64, %s2, [#allocation4]
    $region21: #{tpu_custom_call.1} parent=1 // pred_fallthru
      _
    // Predicated region
    $region22: #{tpu_custom_call.1} parent=1 // pred_check
      _
    $region23: #{tpu_custom_call.1} parent=1 // pred_check_branch
      %115 = sbr.rel (0) target = $region25
    $region24: #{tpu_custom_call.1} parent=1 // pred_region
      %116 = dma.done [#allocation4], 64
    $region25: #{tpu_custom_call.1} parent=1 // pred_fallthru
      _
    %117 = vsyncpa [#allocation3], 1
    %118 = vsyncpa [#allocation4], 1
    %119 = vsyncpa [#allocation5], 1

</llo_original>
